<compile_context>
chip_gen: v6e
topology: v6e:2x2x1
jax: 0.10.0
libtpu: 0.0.40
codegen_flags: <defaults>
</compile_context>

<pallas_src>
import jax
import jax.numpy as jnp
from jax.experimental import pallas as pl
from jax.experimental.pallas import tpu as pltpu


def _round_up(n, m):
    return ((n + m - 1) // m) * m


def cem_mlp_kernel(x_ref, w1_ref, b1_ref, w2_ref, b2_ref, o_ref):
    # x_ref:  (tb, state_dim)  streamed batch tile (f32)
    # w1_ref: (state_dim, H_pad), w2_ref: (H_pad, A_pad)  VMEM-resident weights
    # b1_ref: (1, H_pad), b2_ref: (1, A_pad)              VMEM-resident f32 biases
    # o_ref:  (tb, action_n)   narrow, HBM-cheap logits store
    x = x_ref[...].astype(w1_ref.dtype)
    h = jnp.dot(x, w1_ref[...], preferred_element_type=jnp.float32)
    h = jnp.maximum(h + b1_ref[...], 0.0)          # nn.ReLU (f32 VPU, v5e-safe)
    y = jnp.dot(h.astype(w2_ref.dtype), w2_ref[...],
                preferred_element_type=jnp.float32)
    y = y + b2_ref[...]
    o_ref[...] = y[:, : o_ref.shape[1]]            # drop lane padding before the store


def pack_cem_params(w1, b1, w2, b2, dtype=jnp.bfloat16):
    """Zero-pad hidden/action dims to lane width; keep biases in f32."""
    state_dim, hidden = w1.shape
    action_n = w2.shape[1]
    h_pad = _round_up(hidden, 128)
    a_pad = _round_up(action_n, 128)

    w1p = jnp.zeros((state_dim, h_pad), jnp.float32).at[:, :hidden].set(w1).astype(dtype)
    b1p = jnp.zeros((1, h_pad), jnp.float32).at[0, :hidden].set(jnp.reshape(b1, (-1,)))
    w2p = jnp.zeros((h_pad, a_pad), jnp.float32).at[:hidden, :action_n].set(w2).astype(dtype)
    b2p = jnp.zeros((1, a_pad), jnp.float32).at[0, :action_n].set(jnp.reshape(b2, (-1,)))
    return w1p, b1p, w2p, b2p


def _choose_batch_tiling(B, batch_tile, tc_cores=2):
    """tb (multiple of 8) and num_tiles (even when >1, for v7x's 2 TCs)."""
    batch_tile = max(8, _round_up(batch_tile, 8))
    if B <= batch_tile:
        return _round_up(B, 8), 1
    num_tiles = pl.cdiv(B, batch_tile)
    if num_tiles > 1:
        num_tiles = _round_up(num_tiles, tc_cores)
    tb = _round_up(pl.cdiv(B, num_tiles), 8)
    return tb, num_tiles


def cem_forward(x, w1, b1, w2, b2, *, use_bf16=True, batch_tile=4096):
    """x: [B, state_dim] f32; returns logits [B, action_n] f32."""
    B, state_dim = x.shape
    action_n = w2.shape[1]
    dtype = jnp.bfloat16 if use_bf16 else jnp.float32

    w1p, b1p, w2p, b2p = pack_cem_params(w1, b1, w2, b2, dtype)
    h_pad = w1p.shape[1]
    a_pad = w2p.shape[1]

    tb, num_tiles = _choose_batch_tiling(B, batch_tile)
    b_pad = tb * num_tiles
    x_in = x if b_pad == B else jnp.pad(x, ((0, b_pad - B), (0, 0)))

    out = pl.pallas_call(
        cem_mlp_kernel,
        out_shape=jax.ShapeDtypeStruct((b_pad, action_n), jnp.float32),
        grid=(num_tiles,),
        in_specs=[
            pl.BlockSpec((tb, state_dim), lambda i: (i, 0)),   # streamed rows
            pl.BlockSpec((state_dim, h_pad), lambda i: (0, 0)),  # resident weights
            pl.BlockSpec((1, h_pad), lambda i: (0, 0)),          # resident bias 1
            pl.BlockSpec((h_pad, a_pad), lambda i: (0, 0)),      # resident weights
            pl.BlockSpec((1, a_pad), lambda i: (0, 0)),          # resident bias 2
        ],
        out_specs=pl.BlockSpec((tb, action_n), lambda i: (i, 0)),  # narrow logits
        compiler_params=pltpu.CompilerParams(
            dimension_semantics=("parallel",)),   # v7x: shard batch tiles over 2 TCs
    )(x_in, w1p, b1p, w2p, b2p)
    return out if b_pad == B else out[:B]


def init_cem_params(key, state_dim, hidden_layer_dim, action_n):
    """Deterministic init mirroring torch.nn.Linear default (U(-1/sqrt(fan_in), +))."""
    k1, k2, k3, k4 = jax.random.split(key, 4)
    bound1 = 1.0 / jnp.sqrt(jnp.float32(state_dim))
    bound2 = 1.0 / jnp.sqrt(jnp.float32(hidden_layer_dim))
    w1 = jax.random.uniform(k1, (state_dim, hidden_layer_dim), jnp.float32,
                            -bound1, bound1)
    b1 = jax.random.uniform(k2, (1, hidden_layer_dim), jnp.float32,
                            -bound1, bound1)
    w2 = jax.random.uniform(k3, (hidden_layer_dim, action_n), jnp.float32,
                            -bound2, bound2)
    b2 = jax.random.uniform(k4, (1, action_n), jnp.float32,
                            -bound2, bound2)
    return w1, b1, w2, b2


if __name__ == "__main__":
    # Lunar-lander-ish dims.
    state_dim, hidden_layer_dim, action_n = 8, 32, 4

    key = jax.random.PRNGKey(0)
    kx, kp, kx2 = jax.random.split(key, 3)
    w1, b1, w2, b2 = init_cem_params(kp, state_dim, hidden_layer_dim, action_n)

    def ref_forward(xx):  # pure-JAX reference of Linear -> ReLU -> Linear
        return jnp.maximum(xx @ w1 + b1, 0.0) @ w2 + b2

    # Small batch (single grid step), exact f32 path.
    x_small = jax.random.normal(kx, (8, state_dim), jnp.float32)
    out_f32 = cem_forward(x_small, w1, b1, w2, b2, use_bf16=False)
    jax.block_until_ready(out_f32)
    assert out_f32.shape == (8, action_n)
    assert jnp.allclose(out_f32, ref_forward(x_small), atol=1e-4, rtol=1e-4)

    # bf16-operand / f32-accumulate path (MXU peak on all gens) -- looser tolerance.
    out_bf16 = cem_forward(x_small, w1, b1, w2, b2, use_bf16=True)
    jax.block_until_ready(out_bf16)
    assert jnp.allclose(out_bf16, ref_forward(x_small), atol=3e-2, rtol=3e-2)

    # Larger, non-multiple batch with a small batch_tile: exercises multi-tile
    # grid (even tile count), batch padding and the narrow logits store.
    x_big = jax.random.normal(kx2, (1030, state_dim), jnp.float32)
    out_big = cem_forward(x_big, w1, b1, w2, b2, use_bf16=False, batch_tile=256)
    jax.block_until_ready(out_big)
    assert out_big.shape == (1030, action_n)
    assert jnp.allclose(out_big, ref_forward(x_big), atol=1e-4, rtol=1e-4)

    print("KERNEL_OK")
</pallas_src>

<mosaic_0001>
module attributes {stable_mosaic.version = 11 : i64} {
  func.func @cem_mlp_kernel(%arg0: i32, %arg1: memref<8x8xf32, #tpu.memory_space<vmem>>, %arg2: memref<8x128xf32, #tpu.memory_space<vmem>>, %arg3: memref<1x128xf32, #tpu.memory_space<vmem>>, %arg4: memref<128x128xf32, #tpu.memory_space<vmem>>, %arg5: memref<1x128xf32, #tpu.memory_space<vmem>>, %arg6: memref<8x4xf32, #tpu.memory_space<vmem>>) attributes {dimension_semantics = [#tpu.dimension_semantics<parallel>], iteration_bounds = array<i64: 1>, scalar_prefetch = 0 : i64, scratch_operands = 0 : i64, tpu.core_type = #tpu.core_type<tc>, window_params = [{transform_indices = @transform_0, window_bounds = array<i64: 8, 8>}, {pipeline_mode = #tpu.pipeline_mode<synchronous>, transform_indices = @transform_1, window_bounds = array<i64: 8, 128>}, {pipeline_mode = #tpu.pipeline_mode<synchronous>, transform_indices = @transform_2, window_bounds = array<i64: 1, 128>}, {pipeline_mode = #tpu.pipeline_mode<synchronous>, transform_indices = @transform_3, window_bounds = array<i64: 128, 128>}, {pipeline_mode = #tpu.pipeline_mode<synchronous>, transform_indices = @transform_4, window_bounds = array<i64: 1, 128>}, {transform_indices = @transform_5, window_bounds = array<i64: 8, 4>}]} {
    %c0 = arith.constant 0 : index
    %c0_0 = arith.constant 0 : index
    %0 = vector.load %arg1[%c0, %c0_0] : memref<8x8xf32, #tpu.memory_space<vmem>>, vector<8x8xf32>
    %c0_1 = arith.constant 0 : index
    %c0_2 = arith.constant 0 : index
    %1 = vector.load %arg2[%c0_1, %c0_2] : memref<8x128xf32, #tpu.memory_space<vmem>>, vector<8x128xf32>
    %cst = arith.constant dense<0.000000e+00> : vector<8x128xf32>
    %2 = tpu.matmul %0, %1, %cst {dimension_numbers = #tpu.dot_dimension_numbers<[1], [0], [0], [1], [0, 0, 1, 1], [], []>} : vector<8x8xf32>, vector<8x128xf32>, vector<8x128xf32> -> vector<8x128xf32>
    %c0_3 = arith.constant 0 : index
    %c0_4 = arith.constant 0 : index
    %3 = vector.load %arg3[%c0_3, %c0_4] : memref<1x128xf32, #tpu.memory_space<vmem>>, vector<1x128xf32>
    %4 = vector.broadcast %3 : vector<1x128xf32> to vector<8x128xf32>
    %5 = arith.addf %2, %4 : vector<8x128xf32>
    %cst_5 = arith.constant 0.000000e+00 : f32
    %6 = vector.broadcast %cst_5 : f32 to vector<8x128xf32>
    %7 = arith.maximumf %5, %6 : vector<8x128xf32>
    %c0_6 = arith.constant 0 : index
    %c0_7 = arith.constant 0 : index
    %8 = vector.load %arg4[%c0_6, %c0_7] : memref<128x128xf32, #tpu.memory_space<vmem>>, vector<128x128xf32>
    %cst_8 = arith.constant dense<0.000000e+00> : vector<8x128xf32>
    %9 = tpu.matmul %7, %8, %cst_8 {dimension_numbers = #tpu.dot_dimension_numbers<[1], [0], [0], [1], [0, 0, 1, 1], [], []>} : vector<8x128xf32>, vector<128x128xf32>, vector<8x128xf32> -> vector<8x128xf32>
    %c0_9 = arith.constant 0 : index
    %c0_10 = arith.constant 0 : index
    %10 = vector.load %arg5[%c0_9, %c0_10] : memref<1x128xf32, #tpu.memory_space<vmem>>, vector<1x128xf32>
    %11 = vector.broadcast %10 : vector<1x128xf32> to vector<8x128xf32>
    %12 = arith.addf %9, %11 : vector<8x128xf32>
    %13 = vector.extract_strided_slice %12 {offsets = [0, 0], sizes = [8, 4], strides = [1, 1]} : vector<8x128xf32> to vector<8x4xf32>
    %c0_11 = arith.constant 0 : index
    %c0_12 = arith.constant 0 : index
    %14 = vector.load %arg6[%c0_11, %c0_12] : memref<8x4xf32, #tpu.memory_space<vmem>>, vector<8x4xf32>
    tpu.vector_store %arg6[%c0_11, %c0_12], %13 {strides = array<i32>} : memref<8x4xf32, #tpu.memory_space<vmem>>, vector<8x4xf32>,
    return
  }
  func.func @transform_0(%arg0: i32) -> (i32, i32) {
    %c0_i32 = arith.constant 0 : i32
    %c0_i32_0 = arith.constant 0 : i32
    return %arg0, %c0_i32 : i32, i32
  }
  func.func @transform_1(%arg0: i32) -> (i32, i32) {
    %c0_i32 = arith.constant 0 : i32
    %c0_i32_0 = arith.constant 0 : i32
    %c0_i32_1 = arith.constant 0 : i32
    return %c0_i32, %c0_i32_0 : i32, i32
  }
  func.func @transform_2(%arg0: i32) -> (i32, i32) {
    %c0_i32 = arith.constant 0 : i32
    %c0_i32_0 = arith.constant 0 : i32
    %c0_i32_1 = arith.constant 0 : i32
    return %c0_i32, %c0_i32_0 : i32, i32
  }
  func.func @transform_3(%arg0: i32) -> (i32, i32) {
    %c0_i32 = arith.constant 0 : i32
    %c0_i32_0 = arith.constant 0 : i32
    %c0_i32_1 = arith.constant 0 : i32
    return %c0_i32, %c0_i32_0 : i32, i32
  }
  func.func @transform_4(%arg0: i32) -> (i32, i32) {
    %c0_i32 = arith.constant 0 : i32
    %c0_i32_0 = arith.constant 0 : i32
    %c0_i32_1 = arith.constant 0 : i32
    return %c0_i32, %c0_i32_0 : i32, i32
  }
  func.func @transform_5(%arg0: i32) -> (i32, i32) {
    %c0_i32 = arith.constant 0 : i32
    %c0_i32_0 = arith.constant 0 : i32
    return %arg0, %c0_i32 : i32, i32
  }
}

</mosaic_0001>

<llo_original>
// kernel: tpu_custom_call.1
$region0: #{tpu_custom_call.1}
  #allocation0 [shape = 'u32[]', space=smem, size = 0x4, offset = 0x4, fixed_abs, tag = 'smem constant byte address 0x4 - core index']
  #allocation1 [shape = 'u32[144,128]{1,0:T(1,128)}', space=vmem, size = 0x12000, scoped, tag = 'internal scratch']
  %s0 = inlined_call_operand.hbm [shape: f32[8,8], index: 0, kind: input, shape index: {}]
  %s1 = inlined_call_operand.hbm [shape: f32[8,128], index: 1, kind: input, shape index: {}]
  %s2 = inlined_call_operand.vmem [shape: f32[1,128], index: 2, kind: input, shape index: {}]
  %s3 = inlined_call_operand.hbm [shape: f32[128,128], index: 3, kind: input, shape index: {}]
  %s4 = inlined_call_operand.vmem [shape: f32[1,128], index: 4, kind: input, shape index: {}]
  %s5 = inlined_call_operand.vmem [shape: f32[8,4], index: 5, kind: output, shape index: {}]
  %s6 = sld [smem:[#allocation0]]
  $region42: #{tpu_custom_call.1} parent=0
    _
  %s8 = ssub.s32 1, %s6
  %s9 = scalar_select 0, %s8, %s6
  $region1: #{tpu_custom_call.1} parent=0
    #allocation2 [shape = 'u8[4096]{0}', space=vmem, size = 0x1000, scoped, tag = 'input window, operand 0, single buffered']
    #allocation3 [shape = 's32[1]{0}', space=sflag, size = 0x4, scoped, tag = 'scoped memory for tpu_custom_call.1']
    #allocation4 [shape = 'u8[4096]{0}', space=vmem, size = 0x1000, scoped, tag = 'input window, operand 1, single buffered']
    #allocation5 [shape = 's32[1]{0}', space=sflag, size = 0x4, scoped, tag = 'scoped memory for tpu_custom_call.1']
    #allocation6 [shape = 'u8[65536]{0}', space=vmem, size = 0x10000, scoped, tag = 'input window, operand 3, single buffered']
    %10 = vsyncpa [#allocation3], 0
    %11 = vsyncpa [#allocation5], 0
    // Predicated region
    $region2: #{tpu_custom_call.1} parent=1 // pred_check
      _
    $region3: #{tpu_custom_call.1} parent=1 // pred_check_branch
      %13 = sbr.rel (0) target = $region5
    $region4: #{tpu_custom_call.1} parent=1 // pred_region
      %s15 = ssub.s32 128, 128
      %16 = vsyncadd [#allocation3], %s15
      %s18 = sshll.u32 [#allocation2], 4
      %s19 = int_to_ptr.vmem [resolvable:$true] %s18
      %21 = dma.hbm_to_vmem [thread:$0]  %s0, 128, %s19, [#allocation3]
    $region5: #{tpu_custom_call.1} parent=1 // pred_fallthru
      _
    // Predicated region
    $region6: #{tpu_custom_call.1} parent=1 // pred_check
      _
    $region7: #{tpu_custom_call.1} parent=1 // pred_check_branch
      %23 = sbr.rel (0) target = $region9
    $region8: #{tpu_custom_call.1} parent=1 // pred_region
      %s25 = ssub.s32 128, 128
      %26 = vsyncadd [#allocation5], %s25
      %s28 = sshll.u32 [#allocation4], 4
      %s29 = int_to_ptr.vmem [resolvable:$true] %s28
      %31 = dma.hbm_to_vmem [thread:$0]  %s1, 128, %s29, [#allocation5]
    $region9: #{tpu_custom_call.1} parent=1 // pred_fallthru
      _
    // Predicated region
    $region10: #{tpu_custom_call.1} parent=1 // pred_check
      _
    $region11: #{tpu_custom_call.1} parent=1 // pred_check_branch
      %33 = sbr.rel (0) target = $region13
    $region12: #{tpu_custom_call.1} parent=1 // pred_region
      _
    $region13: #{tpu_custom_call.1} parent=1 // pred_fallthru
      _
    // Predicated region
    $region14: #{tpu_custom_call.1} parent=1 // pred_check
      _
    $region15: #{tpu_custom_call.1} parent=1 // pred_check_branch
      %35 = sbr.rel (0) target = $region17
    $region16: #{tpu_custom_call.1} parent=1 // pred_region
      %s37 = ssub.s32 2048, 2048
      %38 = vsyncadd [#allocation5], %s37
      %s39 = sshll.u32 [#allocation6], 4
      %s40 = int_to_ptr.vmem [resolvable:$true] %s39
      %45 = dma.hbm_to_vmem [thread:$0]  %s3, 2048, %s40, [#allocation5], 128, 128, 8
    $region17: #{tpu_custom_call.1} parent=1 // pred_fallthru
      _
    // Predicated region
    $region18: #{tpu_custom_call.1} parent=1 // pred_check
      _
    $region19: #{tpu_custom_call.1} parent=1 // pred_check_branch
      %47 = sbr.rel (0) target = $region21
    $region20: #{tpu_custom_call.1} parent=1 // pred_region
      _
    $region21: #{tpu_custom_call.1} parent=1 // pred_fallthru
      _
    // Predicated region
    $region22: #{tpu_custom_call.1} parent=1 // pred_check
      _
    $region23: #{tpu_custom_call.1} parent=1 // pred_check_branch
      %49 = sbr.rel (0) target = $region25
    $region24: #{tpu_custom_call.1} parent=1 // pred_region
      %50 = dma.done [#allocation3], 128
    $region25: #{tpu_custom_call.1} parent=1 // pred_fallthru
      _
    // Predicated region
    $region26: #{tpu_custom_call.1} parent=1 // pred_check
      _
    $region27: #{tpu_custom_call.1} parent=1 // pred_check_branch
      %52 = sbr.rel (0) target = $region29
    $region28: #{tpu_custom_call.1} parent=1 // pred_region
      %53 = dma.done [#allocation5], 128
    $region29: #{tpu_custom_call.1} parent=1 // pred_fallthru
      _
    // Predicated region
    $region30: #{tpu_custom_call.1} parent=1 // pred_check
      _
    $region31: #{tpu_custom_call.1} parent=1 // pred_check_branch
      %55 = sbr.rel (0) target = $region33
    $region32: #{tpu_custom_call.1} parent=1 // pred_region
      %56 = dma.done [#allocation5], 2048
    $region33: #{tpu_custom_call.1} parent=1 // pred_fallthru
      _
    %v57 = vld [vmem:[#allocation2] sm:$0xff]
    %v58 = vld [vmem:[#allocation4] sm:$0xff]
    %v59 = vld [vmem:[%s2] sm:$0x1]
    %v61 = vlaneseq
    %v62 = vshrl.u32 %v61, 7
    %v63 = vsub.s32 0, %v62
    %v64 = vrot.slane %v59, %v63
    %vm66 = vcmask 64512
    %v68 = vsel %vm66, %v57, 0
    %70 = vmatprep.subr.mxu0 0.0
    %71 = vmatpush1.msra.mxu0 0.0
    %72 = vmatprep.subr.mxu0 0.0
    %73 = vmatpush1.msra.mxu0 0.0
    %74 = vmatprep.subr.mxu0 0.0
    %75 = vmatpush1.msra.mxu0 0.0
    %76 = vmatprep.subr.mxu0 0.0
    %77 = vmatpush1.msra.mxu0 0.0
    %78 = vmatprep.subr.mxu0 0.0
    %79 = vmatpush1.msra.mxu0 0.0
    %80 = vmatprep.subr.mxu0 0.0
    %81 = vmatpush1.msra.mxu0 0.0
    %82 = vmatprep.subr.mxu0 0.0
    %83 = vmatpush1.msra.mxu0 0.0
    %84 = vmatprep.subr.mxu0 0.0
    %85 = vmatpush1.msra.mxu0 0.0
    %86 = vmatprep.subr.mxu0 0.0
    %87 = vmatpush1.msra.mxu0 0.0
    %88 = vmatprep.subr.mxu0 0.0
    %89 = vmatpush1.msra.mxu0 0.0
    %90 = vmatprep.subr.mxu0 0.0
    %91 = vmatpush1.msra.mxu0 0.0
    %92 = vmatprep.subr.mxu0 0.0
    %93 = vmatpush1.msra.mxu0 0.0
    %94 = vmatprep.subr.mxu0 0.0
    %95 = vmatpush1.msra.mxu0 0.0
    %96 = vmatprep.subr.mxu0 0.0
    %97 = vmatpush1.msra.mxu0 0.0
    %98 = vmatprep.subr.mxu0 0.0
    %99 = vmatpush1.msra.mxu0 0.0
    %100 = vmatprep.subr.mxu0 0.0
    %101 = vmatpush1.msra.mxu0 %v58
    %102 = vmatprep.subr.mxu0 0.0
    %103 = vmatpush2.msra.mxu0 0.0
    %104 = vmatprep.subr.mxu0 0.0
    %105 = vmatpush2.msra.mxu0 0.0
    %106 = vmatprep.subr.mxu0 0.0
    %107 = vmatpush2.msra.mxu0 0.0
    %108 = vmatprep.subr.mxu0 0.0
    %109 = vmatpush2.msra.mxu0 0.0
    %110 = vmatprep.subr.mxu0 0.0
    %111 = vmatpush2.msra.mxu0 0.0
    %112 = vmatprep.subr.mxu0 0.0
    %113 = vmatpush2.msra.mxu0 0.0
    %114 = vmatprep.subr.mxu0 0.0
    %115 = vmatpush2.msra.mxu0 0.0
    %116 = vmatprep.subr.mxu0 0.0
    %117 = vmatpush2.msra.mxu0 0.0
    %118 = vmatprep.subr.mxu0 0.0
    %119 = vmatpush2.msra.mxu0 0.0
    %120 = vmatprep.subr.mxu0 0.0
    %121 = vmatpush2.msra.mxu0 0.0
    %122 = vmatprep.subr.mxu0 0.0
    %123 = vmatpush2.msra.mxu0 0.0
    %124 = vmatprep.subr.mxu0 0.0
    %125 = vmatpush2.msra.mxu0 0.0
    %126 = vmatprep.subr.mxu0 0.0
    %127 = vmatpush2.msra.mxu0 0.0
    %128 = vmatprep.subr.mxu0 0.0
    %129 = vmatpush2.msra.mxu0 0.0
    %130 = vmatprep.subr.mxu0 0.0
    %131 = vmatpush2.msra.mxu0 0.0
    %132 = vmatprep.subr.mxu0 0.0
    %133 = vmatpush2.msra.mxu0 0.0
    %134 = vmatprep.mubr.f32.mxu0 0.0
    %135 = vmatmul.mubr.f32.gmra.mxu0 %v68
    %v136 = vpop.f32.mrf.mxu0
    %v137 = vadd.f32 %v64, %v136
    %v138 = vpop.f32.mrf.mxu0
    %139 = vdwg.mxu0
    %v140 = vmax.f32 %v137, 0.0
    %v141 = vld [vmem:[#allocation6] sm:$0xff]
    %v142 = vld [vmem:[#allocation6 + $0x8] sm:$0xff]
    %v143 = vld [vmem:[#allocation6 + $0x10] sm:$0xff]
    %v144 = vld [vmem:[#allocation6 + $0x18] sm:$0xff]
    %v145 = vld [vmem:[#allocation6 + $0x20] sm:$0xff]
    %v146 = vld [vmem:[#allocation6 + $0x28] sm:$0xff]
    %v147 = vld [vmem:[#allocation6 + $0x30] sm:$0xff]
    %v148 = vld [vmem:[#allocation6 + $0x38] sm:$0xff]
    %v149 = vld [vmem:[#allocation6 + $0x40] sm:$0xff]
    %v150 = vld [vmem:[#allocation6 + $0x48] sm:$0xff]
    %v151 = vld [vmem:[#allocation6 + $0x50] sm:$0xff]
    %v152 = vld [vmem:[#allocation6 + $0x58] sm:$0xff]
    %v153 = vld [vmem:[#allocation6 + $0x60] sm:$0xff]
    %v154 = vld [vmem:[#allocation6 + $0x68] sm:$0xff]
    %v155 = vld [vmem:[#allocation6 + $0x70] sm:$0xff]
    %v156 = vld [vmem:[#allocation6 + $0x78] sm:$0xff]
    %v157 = vld [vmem:[%s4] sm:$0x1]
    %v159 = vlaneseq
    %v160 = vshrl.u32 %v159, 7
    %v161 = vsub.s32 0, %v160
    %v162 = vrot.slane %v157, %v161
    %164 = vmatprep.subr.mxu0 0.0
    %165 = vmatpush1.msra.mxu0 %v156
    %166 = vmatprep.subr.mxu0 0.0
    %167 = vmatpush1.msra.mxu0 %v155
    %168 = vmatprep.subr.mxu0 0.0
    %169 = vmatpush1.msra.mxu0 %v154
    %170 = vmatprep.subr.mxu0 0.0
    %171 = vmatpush1.msra.mxu0 %v153
    %172 = vmatprep.subr.mxu0 0.0
    %173 = vmatpush1.msra.mxu0 %v152
    %174 = vmatprep.subr.mxu0 0.0
    %175 = vmatpush1.msra.mxu0 %v151
    %176 = vmatprep.subr.mxu0 0.0
    %177 = vmatpush1.msra.mxu0 %v150
    %178 = vmatprep.subr.mxu0 0.0
    %179 = vmatpush1.msra.mxu0 %v149
    %180 = vmatprep.subr.mxu0 0.0
    %181 = vmatpush1.msra.mxu0 %v148
    %182 = vmatprep.subr.mxu0 0.0
    %183 = vmatpush1.msra.mxu0 %v147
    %184 = vmatprep.subr.mxu0 0.0
    %185 = vmatpush1.msra.mxu0 %v146
    %186 = vmatprep.subr.mxu0 0.0
    %187 = vmatpush1.msra.mxu0 %v145
    %188 = vmatprep.subr.mxu0 0.0
    %189 = vmatpush1.msra.mxu0 %v144
    %190 = vmatprep.subr.mxu0 0.0
    %191 = vmatpush1.msra.mxu0 %v143
    %192 = vmatprep.subr.mxu0 0.0
    %193 = vmatpush1.msra.mxu0 %v142
    %194 = vmatprep.subr.mxu0 0.0
    %195 = vmatpush1.msra.mxu0 %v141
    %196 = vmatprep.subr.mxu0 0.0
    %197 = vmatpush2.msra.mxu0 0.0
    %198 = vmatprep.subr.mxu0 0.0
    %199 = vmatpush2.msra.mxu0 0.0
    %200 = vmatprep.subr.mxu0 0.0
    %201 = vmatpush2.msra.mxu0 0.0
    %202 = vmatprep.subr.mxu0 0.0
    %203 = vmatpush2.msra.mxu0 0.0
    %204 = vmatprep.subr.mxu0 0.0
    %205 = vmatpush2.msra.mxu0 0.0
    %206 = vmatprep.subr.mxu0 0.0
    %207 = vmatpush2.msra.mxu0 0.0
    %208 = vmatprep.subr.mxu0 0.0
    %209 = vmatpush2.msra.mxu0 0.0
    %210 = vmatprep.subr.mxu0 0.0
    %211 = vmatpush2.msra.mxu0 0.0
    %212 = vmatprep.subr.mxu0 0.0
    %213 = vmatpush2.msra.mxu0 0.0
    %214 = vmatprep.subr.mxu0 0.0
    %215 = vmatpush2.msra.mxu0 0.0
    %216 = vmatprep.subr.mxu0 0.0
    %217 = vmatpush2.msra.mxu0 0.0
    %218 = vmatprep.subr.mxu0 0.0
    %219 = vmatpush2.msra.mxu0 0.0
    %220 = vmatprep.subr.mxu0 0.0
    %221 = vmatpush2.msra.mxu0 0.0
    %222 = vmatprep.subr.mxu0 0.0
    %223 = vmatpush2.msra.mxu0 0.0
    %224 = vmatprep.subr.mxu0 0.0
    %225 = vmatpush2.msra.mxu0 0.0
    %226 = vmatprep.subr.mxu0 0.0
    %227 = vmatpush2.msra.mxu0 0.0
    %228 = vmatprep.mubr.f32.mxu0 0.0
    %229 = vmatmul.mubr.f32.gmra.mxu0 %v140
    %v230 = vpop.f32.mrf.mxu0
    %v231 = vadd.f32 %v162, %v230
    %v232 = vpop.f32.mrf.mxu0
    %233 = vdwg.mxu0
    %vm234 = vcmask 31744
    %235 = vst.msk [vmem:[%s5] sm:$0xff] %vm234, %v231
    // Predicated region
    $region34: #{tpu_custom_call.1} parent=1 // pred_check
      _
    $region35: #{tpu_custom_call.1} parent=1 // pred_check_branch
      %237 = sbr.rel (0) target = $region37
    $region36: #{tpu_custom_call.1} parent=1 // pred_region
      _
    $region37: #{tpu_custom_call.1} parent=1 // pred_fallthru
      _
    // Predicated region
    $region38: #{tpu_custom_call.1} parent=1 // pred_check
      _
    $region39: #{tpu_custom_call.1} parent=1 // pred_check_branch
      %239 = sbr.rel (0) target = $region41
    $region40: #{tpu_custom_call.1} parent=1 // pred_region
      _
    $region41: #{tpu_custom_call.1} parent=1 // pred_fallthru
      _
    %240 = vsyncpa [#allocation3], 1
    %241 = vsyncpa [#allocation5], 1

</llo_original>
